<compile_context>
chip_gen: v5e
topology: v5e:2x2
jax: 0.10.0
libtpu: 0.0.40
codegen_flags: <defaults>
</compile_context>

<pallas_src>
import functools

import jax
import jax.numpy as jnp
import numpy as np
from jax.experimental import pallas as pl
from jax.experimental.pallas import tpu as pltpu

BN_EPS = 1e-5
LANE = 128      # lane width (last dim)
SUBLANE = 8     # f32 sublane width (second-to-last dim)


def _round_up(x, m):
    return ((x + m - 1) // m) * m


def _full_spec(shape):
    # single grid point, whole array resident in VMEM
    return pl.BlockSpec(shape, lambda: tuple(0 for _ in shape))


# ---------------------------------------------------------------------------
# Fused MLP kernel factory.
#
# Ref layout (all padded, f32):
#   x_ref                                   (N_pad, D0_pad)
#   per hidden layer i:  w_i (Din_pad, H_pad), gamma_i (1, H_pad), beta_i (1, H_pad)
#   final layer:         w_L (H_pad, Dout_pad), b_L (1, Dout_pad)
#   o_ref                                   (N_pad, Dout_pad)
#
# num_hidden / n_valid / n_pad are Python-static (baked in at trace time).
# ---------------------------------------------------------------------------
def _make_fused_mlp_kernel(num_hidden, n_valid, n_pad):
    mask_rows = n_pad != n_valid
    inv_n = 1.0 / float(n_valid)

    def kernel(*refs):
        x_ref = refs[0]
        o_ref = refs[-1]
        param_refs = refs[1:-1]

        h = x_ref[...]  # (N_pad, D_pad), padded rows/cols are zero

        if mask_rows:
            row_ids = jax.lax.broadcasted_iota(jnp.int32, (n_pad, 1), 0)
            row_mask = (row_ids < n_valid).astype(jnp.float32)

        idx = 0
        for _ in range(num_hidden):
            w_ref, gamma_ref, beta_ref = param_refs[idx:idx + 3]
            idx += 3

            # Linear (bias dropped: cancelled exactly by BN mean subtraction).
            y = jnp.dot(h, w_ref[...], preferred_element_type=jnp.float32)

            # BatchNorm1d (train mode), single-pass batch statistics.
            # Padded rows of h are zero, so they contribute nothing; divide by
            # the true batch size n_valid.
            s = jnp.sum(y, axis=0, keepdims=True)            # (1, H)
            sq = jnp.sum(y * y, axis=0, keepdims=True)       # (1, H)
            mean = s * inv_n
            var = jnp.maximum(sq * inv_n - mean * mean, 0.0)
            scale = gamma_ref[...] * jax.lax.rsqrt(var + BN_EPS)   # (1, H)
            shift = beta_ref[...] - mean * scale                    # (1, H)

            # normalize + affine + ReLU as one FMA sweep over the (N, H) tile.
            h = jnp.maximum(y * scale + shift, 0.0)

            if mask_rows:
                # keep padded batch rows at zero so they never pollute the
                # next layer's batch statistics.
                h = h * row_mask

        # Final plain Linear (bias kept).
        w_ref, b_ref = param_refs[idx:idx + 2]
        o_ref[...] = (
            jnp.dot(h, w_ref[...], preferred_element_type=jnp.float32)
            + b_ref[...]
        )

    return kernel


# ---------------------------------------------------------------------------
# Wrapper: pads everything to (8, 128)-aligned shapes, runs one fused
# pallas_call, slices the real output back out.
#
# TODO(synk): for large N / K, add a batch grid with two-pass (accumulated
# sum/sumsq) BN statistics and K-tiling with a VMEM accumulator; at these
# demo sizes everything fits in VMEM in a single grid point.
# ---------------------------------------------------------------------------
@functools.partial(jax.jit, static_argnames=("num_layers",))
def mlp_forward(params, x, num_layers):
    n, d_in = x.shape
    d_out = params["linears"][-1][0].shape[1]

    n_pad = _round_up(n, SUBLANE)
    num_hidden = num_layers - 1

    def pad2d(a, rows, cols):
        return jnp.pad(a, ((0, rows - a.shape[0]), (0, cols - a.shape[1])))

    # pad activations: batch -> multiple of 8, features -> multiple of 128
    x_p = pad2d(x, n_pad, _round_up(d_in, LANE))

    inputs = [x_p]
    in_specs = [_full_spec(x_p.shape)]

    for i in range(num_hidden):
        w, _b = params["linears"][i]           # bias intentionally unused (BN cancels it)
        gamma, beta = params["bn"][i]
        w_p = pad2d(w, _round_up(w.shape[0], LANE), _round_up(w.shape[1], LANE))
        g_p = pad2d(gamma, 1, _round_up(gamma.shape[1], LANE))
        be_p = pad2d(beta, 1, _round_up(beta.shape[1], LANE))
        inputs += [w_p, g_p, be_p]
        in_specs += [_full_spec(w_p.shape), _full_spec(g_p.shape),
                     _full_spec(be_p.shape)]

    w_last, b_last = params["linears"][-1]
    w_p = pad2d(w_last, _round_up(w_last.shape[0], LANE),
                _round_up(w_last.shape[1], LANE))
    b_p = pad2d(b_last, 1, _round_up(b_last.shape[1], LANE))
    inputs += [w_p, b_p]
    in_specs += [_full_spec(w_p.shape), _full_spec(b_p.shape)]

    d_out_pad = w_p.shape[1]
    out_shape = jax.ShapeDtypeStruct((n_pad, d_out_pad), jnp.float32)

    kernel = _make_fused_mlp_kernel(num_hidden, n, n_pad)

    out_p = pl.pallas_call(
        kernel,
        out_shape=out_shape,
        in_specs=in_specs,
        out_specs=_full_spec((n_pad, d_out_pad)),
    )(*inputs)

    return out_p[:n, :d_out]


# ---------------------------------------------------------------------------
# Parameter construction (PyTorch nn.Linear default init: U(-1/sqrt(fan_in),
# 1/sqrt(fan_in)); BatchNorm1d: gamma=1, beta=0). Deterministic via PRNGKey.
# Weights stored pre-transposed as (d_in, d_out) so x @ w == x @ W.T.
# ---------------------------------------------------------------------------
def init_mlp_params(key, num_layers, input_dim, hidden_dim, output_dim):
    if num_layers < 1:
        raise ValueError("number of layers should be positive!")
    dims = ([input_dim] + [hidden_dim] * (num_layers - 1) + [output_dim]
            if num_layers > 1 else [input_dim, output_dim])
    params = {"linears": [], "bn": []}
    for i in range(num_layers):
        d_in, d_out = dims[i], dims[i + 1]
        key, kw, kb = jax.random.split(key, 3)
        bound = 1.0 / np.sqrt(d_in)
        w = jax.random.uniform(kw, (d_in, d_out), jnp.float32, -bound, bound)
        b = jax.random.uniform(kb, (1, d_out), jnp.float32, -bound, bound)
        params["linears"].append((w, b))
    for _ in range(num_layers - 1):
        params["bn"].append(
            (jnp.ones((1, hidden_dim), jnp.float32),
             jnp.zeros((1, hidden_dim), jnp.float32)))
    return params


# Pure-JAX reference (canonical two-pass BN) for verification.
def mlp_forward_ref(params, x, num_layers):
    if num_layers == 1:
        w, b = params["linears"][0]
        return x @ w + b
    h = x
    for i in range(num_layers - 1):
        w, b = params["linears"][i]
        gamma, beta = params["bn"][i]
        y = h @ w + b
        mean = jnp.mean(y, axis=0, keepdims=True)
        var = jnp.mean((y - mean) ** 2, axis=0, keepdims=True)
        y = (y - mean) / jnp.sqrt(var + BN_EPS) * gamma + beta
        h = jnp.maximum(y, 0.0)
    w, b = params["linears"][-1]
    return h @ w + b


if __name__ == "__main__":
    num_layers = 3
    batch = 8
    input_dim = 16
    hidden_dim = 32
    output_dim = 8

    key = jax.random.PRNGKey(0)
    key, kx, kp = jax.random.split(key, 3)
    x = jax.random.normal(kx, (batch, input_dim), jnp.float32)
    params = init_mlp_params(kp, num_layers, input_dim, hidden_dim, output_dim)

    out = mlp_forward(params, x, num_layers)
    out = jax.block_until_ready(out)

    ref = mlp_forward_ref(params, x, num_layers)
    np.testing.assert_allclose(np.asarray(out), np.asarray(ref),
                               rtol=1e-4, atol=1e-4)

    # also exercise the num_layers == 1 (plain Linear) path
    params1 = init_mlp_params(jax.random.PRNGKey(1), 1, input_dim,
                              hidden_dim, output_dim)
    out1 = jax.block_until_ready(mlp_forward(params1, x, 1))
    ref1 = mlp_forward_ref(params1, x, 1)
    np.testing.assert_allclose(np.asarray(out1), np.asarray(ref1),
                               rtol=1e-4, atol=1e-4)

    print("KERNEL_OK")
</pallas_src>

<mosaic_0001>
module attributes {stable_mosaic.version = 11 : i64} {
  func.func @kernel(%arg0: memref<8x128xf32, #tpu.memory_space<vmem>>, %arg1: memref<128x128xf32, #tpu.memory_space<vmem>>, %arg2: memref<1x128xf32, #tpu.memory_space<vmem>>, %arg3: memref<1x128xf32, #tpu.memory_space<vmem>>, %arg4: memref<128x128xf32, #tpu.memory_space<vmem>>, %arg5: memref<1x128xf32, #tpu.memory_space<vmem>>, %arg6: memref<1x128xf32, #tpu.memory_space<vmem>>, %arg7: memref<128x128xf32, #tpu.memory_space<vmem>>, %arg8: memref<1x128xf32, #tpu.memory_space<vmem>>, %arg9: memref<8x128xf32, #tpu.memory_space<vmem>>) attributes {dimension_semantics = [], scalar_prefetch = 0 : i64, scratch_operands = 0 : i64, tpu.core_type = #tpu.core_type<tc>} {
    %c0 = arith.constant 0 : index
    %c0_0 = arith.constant 0 : index
    %0 = vector.load %arg0[%c0, %c0_0] : memref<8x128xf32, #tpu.memory_space<vmem>>, vector<8x128xf32>
    %c0_1 = arith.constant 0 : index
    %c0_2 = arith.constant 0 : index
    %1 = vector.load %arg1[%c0_1, %c0_2] : memref<128x128xf32, #tpu.memory_space<vmem>>, vector<128x128xf32>
    %cst = arith.constant dense<0.000000e+00> : vector<8x128xf32>
    %2 = tpu.matmul %0, %1, %cst {dimension_numbers = #tpu.dot_dimension_numbers<[1], [0], [0], [1], [0, 0, 1, 1], [], []>} : vector<8x128xf32>, vector<128x128xf32>, vector<8x128xf32> -> vector<8x128xf32>
    %cst_3 = arith.constant dense<0.000000e+00> : vector<128xf32>
    %3 = vector.multi_reduction <add>, %2, %cst_3 [0] : vector<8x128xf32> to vector<128xf32>
    %4 = vector.shape_cast %3 : vector<128xf32> to vector<1x128xf32>
    %5 = arith.mulf %2, %2 : vector<8x128xf32>
    %cst_4 = arith.constant dense<0.000000e+00> : vector<128xf32>
    %6 = vector.multi_reduction <add>, %5, %cst_4 [0] : vector<8x128xf32> to vector<128xf32>
    %7 = vector.shape_cast %6 : vector<128xf32> to vector<1x128xf32>
    %cst_5 = arith.constant 1.250000e-01 : f32
    %8 = vector.broadcast %cst_5 : f32 to vector<1x128xf32>
    %9 = arith.mulf %4, %8 : vector<1x128xf32>
    %cst_6 = arith.constant 1.250000e-01 : f32
    %10 = vector.broadcast %cst_6 : f32 to vector<1x128xf32>
    %11 = arith.mulf %7, %10 : vector<1x128xf32>
    %12 = arith.mulf %9, %9 : vector<1x128xf32>
    %13 = arith.subf %11, %12 : vector<1x128xf32>
    %cst_7 = arith.constant 0.000000e+00 : f32
    %14 = vector.broadcast %cst_7 : f32 to vector<1x128xf32>
    %15 = arith.maximumf %13, %14 : vector<1x128xf32>
    %c0_8 = arith.constant 0 : index
    %c0_9 = arith.constant 0 : index
    %16 = vector.load %arg2[%c0_8, %c0_9] : memref<1x128xf32, #tpu.memory_space<vmem>>, vector<1x128xf32>
    %cst_10 = arith.constant 9.99999974E-6 : f32
    %17 = vector.broadcast %cst_10 : f32 to vector<1x128xf32>
    %18 = arith.addf %15, %17 : vector<1x128xf32>
    %19 = math.rsqrt %18 : vector<1x128xf32>
    %20 = arith.mulf %16, %19 : vector<1x128xf32>
    %c0_11 = arith.constant 0 : index
    %c0_12 = arith.constant 0 : index
    %21 = vector.load %arg3[%c0_11, %c0_12] : memref<1x128xf32, #tpu.memory_space<vmem>>, vector<1x128xf32>
    %22 = arith.mulf %9, %20 : vector<1x128xf32>
    %23 = arith.subf %21, %22 : vector<1x128xf32>
    %24 = vector.broadcast %20 : vector<1x128xf32> to vector<8x128xf32>
    %25 = arith.mulf %2, %24 : vector<8x128xf32>
    %26 = vector.broadcast %23 : vector<1x128xf32> to vector<8x128xf32>
    %27 = arith.addf %25, %26 : vector<8x128xf32>
    %cst_13 = arith.constant 0.000000e+00 : f32
    %28 = vector.broadcast %cst_13 : f32 to vector<8x128xf32>
    %29 = arith.maximumf %27, %28 : vector<8x128xf32>
    %c0_14 = arith.constant 0 : index
    %c0_15 = arith.constant 0 : index
    %30 = vector.load %arg4[%c0_14, %c0_15] : memref<128x128xf32, #tpu.memory_space<vmem>>, vector<128x128xf32>
    %cst_16 = arith.constant dense<0.000000e+00> : vector<8x128xf32>
    %31 = tpu.matmul %29, %30, %cst_16 {dimension_numbers = #tpu.dot_dimension_numbers<[1], [0], [0], [1], [0, 0, 1, 1], [], []>} : vector<8x128xf32>, vector<128x128xf32>, vector<8x128xf32> -> vector<8x128xf32>
    %cst_17 = arith.constant dense<0.000000e+00> : vector<128xf32>
    %32 = vector.multi_reduction <add>, %31, %cst_17 [0] : vector<8x128xf32> to vector<128xf32>
    %33 = vector.shape_cast %32 : vector<128xf32> to vector<1x128xf32>
    %34 = arith.mulf %31, %31 : vector<8x128xf32>
    %cst_18 = arith.constant dense<0.000000e+00> : vector<128xf32>
    %35 = vector.multi_reduction <add>, %34, %cst_18 [0] : vector<8x128xf32> to vector<128xf32>
    %36 = vector.shape_cast %35 : vector<128xf32> to vector<1x128xf32>
    %cst_19 = arith.constant 1.250000e-01 : f32
    %37 = vector.broadcast %cst_19 : f32 to vector<1x128xf32>
    %38 = arith.mulf %33, %37 : vector<1x128xf32>
    %cst_20 = arith.constant 1.250000e-01 : f32
    %39 = vector.broadcast %cst_20 : f32 to vector<1x128xf32>
    %40 = arith.mulf %36, %39 : vector<1x128xf32>
    %41 = arith.mulf %38, %38 : vector<1x128xf32>
    %42 = arith.subf %40, %41 : vector<1x128xf32>
    %cst_21 = arith.constant 0.000000e+00 : f32
    %43 = vector.broadcast %cst_21 : f32 to vector<1x128xf32>
    %44 = arith.maximumf %42, %43 : vector<1x128xf32>
    %c0_22 = arith.constant 0 : index
    %c0_23 = arith.constant 0 : index
    %45 = vector.load %arg5[%c0_22, %c0_23] : memref<1x128xf32, #tpu.memory_space<vmem>>, vector<1x128xf32>
    %cst_24 = arith.constant 9.99999974E-6 : f32
    %46 = vector.broadcast %cst_24 : f32 to vector<1x128xf32>
    %47 = arith.addf %44, %46 : vector<1x128xf32>
    %48 = math.rsqrt %47 : vector<1x128xf32>
    %49 = arith.mulf %45, %48 : vector<1x128xf32>
    %c0_25 = arith.constant 0 : index
    %c0_26 = arith.constant 0 : index
    %50 = vector.load %arg6[%c0_25, %c0_26] : memref<1x128xf32, #tpu.memory_space<vmem>>, vector<1x128xf32>
    %51 = arith.mulf %38, %49 : vector<1x128xf32>
    %52 = arith.subf %50, %51 : vector<1x128xf32>
    %53 = vector.broadcast %49 : vector<1x128xf32> to vector<8x128xf32>
    %54 = arith.mulf %31, %53 : vector<8x128xf32>
    %55 = vector.broadcast %52 : vector<1x128xf32> to vector<8x128xf32>
    %56 = arith.addf %54, %55 : vector<8x128xf32>
    %cst_27 = arith.constant 0.000000e+00 : f32
    %57 = vector.broadcast %cst_27 : f32 to vector<8x128xf32>
    %58 = arith.maximumf %56, %57 : vector<8x128xf32>
    %c0_28 = arith.constant 0 : index
    %c0_29 = arith.constant 0 : index
    %59 = vector.load %arg7[%c0_28, %c0_29] : memref<128x128xf32, #tpu.memory_space<vmem>>, vector<128x128xf32>
    %cst_30 = arith.constant dense<0.000000e+00> : vector<8x128xf32>
    %60 = tpu.matmul %58, %59, %cst_30 {dimension_numbers = #tpu.dot_dimension_numbers<[1], [0], [0], [1], [0, 0, 1, 1], [], []>} : vector<8x128xf32>, vector<128x128xf32>, vector<8x128xf32> -> vector<8x128xf32>
    %c0_31 = arith.constant 0 : index
    %c0_32 = arith.constant 0 : index
    %61 = vector.load %arg8[%c0_31, %c0_32] : memref<1x128xf32, #tpu.memory_space<vmem>>, vector<1x128xf32>
    %62 = vector.broadcast %61 : vector<1x128xf32> to vector<8x128xf32>
    %63 = arith.addf %60, %62 : vector<8x128xf32>
    %c0_33 = arith.constant 0 : index
    %c0_34 = arith.constant 0 : index
    %64 = vector.load %arg9[%c0_33, %c0_34] : memref<8x128xf32, #tpu.memory_space<vmem>>, vector<8x128xf32>
    tpu.vector_store %arg9[%c0_33, %c0_34], %63 {strides = array<i32>} : memref<8x128xf32, #tpu.memory_space<vmem>>, vector<8x128xf32>,
    return
  }
}

</mosaic_0001>

<llo_original>
// kernel: mlp_forward.1
$region0: #{mlp_forward.1}
  #allocation0 [shape = 'u32[]', space=smem, size = 0x4, offset = 0x4, fixed_abs, tag = 'smem constant byte address 0x4 - core index']
  #allocation1 [shape = 'u32[72,128]{1,0:T(1,128)}', space=vmem, size = 0x9000, scoped, tag = 'internal scratch']
  %s0 = inlined_call_operand.vmem [shape: f32[8,128], index: 0, kind: input, shape index: {}]
  %s1 = inlined_call_operand.vmem [shape: f32[128,128], index: 1, kind: input, shape index: {}]
  %s2 = inlined_call_operand.vmem [shape: f32[1,128], index: 2, kind: input, shape index: {}]
  %s3 = inlined_call_operand.vmem [shape: f32[1,128], index: 3, kind: input, shape index: {}]
  %s4 = inlined_call_operand.vmem [shape: f32[128,128], index: 4, kind: input, shape index: {}]
  %s5 = inlined_call_operand.vmem [shape: f32[1,128], index: 5, kind: input, shape index: {}]
  %s6 = inlined_call_operand.vmem [shape: f32[1,128], index: 6, kind: input, shape index: {}]
  %s7 = inlined_call_operand.vmem [shape: f32[128,128], index: 7, kind: input, shape index: {}]
  %s8 = inlined_call_operand.vmem [shape: f32[1,128], index: 8, kind: input, shape index: {}]
  %s9 = inlined_call_operand.hbm [shape: f32[8,128], index: 9, kind: output, shape index: {}]
  %s10 = sld [smem:[#allocation0]]
  $region46: #{mlp_forward.1} parent=0
    _
  %s12 = ssub.s32 1, %s10
  %s13 = scalar_select 0, %s12, %s10
  $region1: #{mlp_forward.1} parent=0
    #allocation2 [shape = 'u8[4096]{0}', space=vmem, size = 0x1000, scoped, tag = 'output window, operand 0, single buffered']
    #allocation3 [shape = 's32[1]{0}', space=sflag, size = 0x4, scoped, tag = 'scoped memory for mlp_forward.1']
    %14 = vsyncpa [#allocation3], 0
    // Predicated region
    $region2: #{mlp_forward.1} parent=1 // pred_check
      _
    $region3: #{mlp_forward.1} parent=1 // pred_check_branch
      %16 = sbr.rel (0) target = $region5
    $region4: #{mlp_forward.1} parent=1 // pred_region
      _
    $region5: #{mlp_forward.1} parent=1 // pred_fallthru
      _
    // Predicated region
    $region6: #{mlp_forward.1} parent=1 // pred_check
      _
    $region7: #{mlp_forward.1} parent=1 // pred_check_branch
      %18 = sbr.rel (0) target = $region9
    $region8: #{mlp_forward.1} parent=1 // pred_region
      _
    $region9: #{mlp_forward.1} parent=1 // pred_fallthru
      _
    // Predicated region
    $region10: #{mlp_forward.1} parent=1 // pred_check
      _
    $region11: #{mlp_forward.1} parent=1 // pred_check_branch
      %20 = sbr.rel (0) target = $region13
    $region12: #{mlp_forward.1} parent=1 // pred_region
      _
    $region13: #{mlp_forward.1} parent=1 // pred_fallthru
      _
    // Predicated region
    $region14: #{mlp_forward.1} parent=1 // pred_check
      _
    $region15: #{mlp_forward.1} parent=1 // pred_check_branch
      %22 = sbr.rel (0) target = $region17
    $region16: #{mlp_forward.1} parent=1 // pred_region
      _
    $region17: #{mlp_forward.1} parent=1 // pred_fallthru
      _
    // Predicated region
    $region18: #{mlp_forward.1} parent=1 // pred_check
      _
    $region19: #{mlp_forward.1} parent=1 // pred_check_branch
      %24 = sbr.rel (0) target = $region21
    $region20: #{mlp_forward.1} parent=1 // pred_region
      _
    $region21: #{mlp_forward.1} parent=1 // pred_fallthru
      _
    // Predicated region
    $region22: #{mlp_forward.1} parent=1 // pred_check
      _
    $region23: #{mlp_forward.1} parent=1 // pred_check_branch
      %26 = sbr.rel (0) target = $region25
    $region24: #{mlp_forward.1} parent=1 // pred_region
      _
    $region25: #{mlp_forward.1} parent=1 // pred_fallthru
      _
    // Predicated region
    $region26: #{mlp_forward.1} parent=1 // pred_check
      _
    $region27: #{mlp_forward.1} parent=1 // pred_check_branch
      %28 = sbr.rel (0) target = $region29
    $region28: #{mlp_forward.1} parent=1 // pred_region
      _
    $region29: #{mlp_forward.1} parent=1 // pred_fallthru
      _
    // Predicated region
    $region30: #{mlp_forward.1} parent=1 // pred_check
      _
    $region31: #{mlp_forward.1} parent=1 // pred_check_branch
      %30 = sbr.rel (0) target = $region33
    $region32: #{mlp_forward.1} parent=1 // pred_region
      _
    $region33: #{mlp_forward.1} parent=1 // pred_fallthru
      _
    // Predicated region
    $region34: #{mlp_forward.1} parent=1 // pred_check
      _
    $region35: #{mlp_forward.1} parent=1 // pred_check_branch
      %32 = sbr.rel (0) target = $region37
    $region36: #{mlp_forward.1} parent=1 // pred_region
      _
    $region37: #{mlp_forward.1} parent=1 // pred_fallthru
      _
    %v33 = vld [vmem:[%s0] sm:$0xff]
    %v34 = vld [vmem:[%s1] sm:$0xff]
    %v35 = vld [vmem:[%s1 + $0x8] sm:$0xff]
    %v36 = vld [vmem:[%s1 + $0x10] sm:$0xff]
    %v37 = vld [vmem:[%s1 + $0x18] sm:$0xff]
    %v38 = vld [vmem:[%s1 + $0x20] sm:$0xff]
    %v39 = vld [vmem:[%s1 + $0x28] sm:$0xff]
    %v40 = vld [vmem:[%s1 + $0x30] sm:$0xff]
    %v41 = vld [vmem:[%s1 + $0x38] sm:$0xff]
    %v42 = vld [vmem:[%s1 + $0x40] sm:$0xff]
    %v43 = vld [vmem:[%s1 + $0x48] sm:$0xff]
    %v44 = vld [vmem:[%s1 + $0x50] sm:$0xff]
    %v45 = vld [vmem:[%s1 + $0x58] sm:$0xff]
    %v46 = vld [vmem:[%s1 + $0x60] sm:$0xff]
    %v47 = vld [vmem:[%s1 + $0x68] sm:$0xff]
    %v48 = vld [vmem:[%s1 + $0x70] sm:$0xff]
    %v49 = vld [vmem:[%s1 + $0x78] sm:$0xff]
    %50 = vmatpush.msra.mxu0 %v49
    %51 = vmatpush.msra.mxu0 %v48
    %52 = vmatpush.msra.mxu0 %v47
    %53 = vmatpush.msra.mxu0 %v46
    %54 = vmatpush.msra.mxu0 %v45
    %55 = vmatpush.msra.mxu0 %v44
    %56 = vmatpush.msra.mxu0 %v43
    %57 = vmatpush.msra.mxu0 %v42
    %58 = vmatpush.msra.mxu0 %v41
    %59 = vmatpush.msra.mxu0 %v40
    %60 = vmatpush.msra.mxu0 %v39
    %61 = vmatpush.msra.mxu0 %v38
    %62 = vmatpush.msra.mxu0 %v37
    %63 = vmatpush.msra.mxu0 %v36
    %64 = vmatpush.msra.mxu0 %v35
    %65 = vmatpush.msra.mxu0 %v34
    %66 = vmatmul.f32.gmra.mxu0 %v33
    %v67 = vpop.f32.mrf.mxu0
    %v68 = vadd.f32 0.0, %v67
    %69 = vdwg.mxu0
    %v70 = vrot.slane %v68, 4
    %v71 = vadd.f32 %v68, %v70
    %v72 = vrot.slane %v71, 2
    %v73 = vadd.f32 %v71, %v72
    %v74 = vrot.slane %v73, 1
    %v75 = vadd.f32 %v73, %v74
    %v76 = vmul.f32 %v68, %v68
    %v77 = vrot.slane %v76, 4
    %v78 = vadd.f32 %v76, %v77
    %v79 = vrot.slane %v78, 2
    %v80 = vadd.f32 %v78, %v79
    %v81 = vrot.slane %v80, 1
    %v82 = vadd.f32 %v80, %v81
    %v83 = vmul.f32 %v75, 0.125
    %v84 = vmul.f32 %v82, 0.125
    %v85 = vmul.f32 %v83, %v83
    %v86 = vsub.f32 %v84, %v85
    %v87 = vmax.f32 %v86, 0.0
    %v88 = vld [vmem:[%s2] sm:$0x1]
    %v89 = vadd.f32 %v87, 1e-05
    %v90 = vrsqrt.pop %v89
    %v91 = vmul.f32 %v90, %v89
    %v92 = vmul.f32 %v91, %v90
    %v93 = vmul.f32 0.5, %v92
    %v94 = vsub.f32 1.5, %v93
    %v95 = vmul.f32 %v90, %v94
    %vm96 = vweird.f32 %v89
    %vm97 = vweird.f32 %v90
    %vm98 = vmor %vm96, %vm97
    %v99 = vsel %vm98, %v90, %v95
    %v100 = vmul.f32 %v88, %v99
    %v101 = vld [vmem:[%s3] sm:$0x1]
    %v102 = vmul.f32 %v83, %v100
    %v103 = vsub.f32 %v101, %v102
    %v105 = vperm.slane %v100, 0
    %v107 = vmul.f32 %v68, %v105
    %v109 = vperm.slane %v103, 0
    %v111 = vadd.f32 %v107, %v109
    %v112 = vmax.f32 %v111, 0.0
    %v113 = vld [vmem:[%s4] sm:$0xff]
    %v114 = vld [vmem:[%s4 + $0x8] sm:$0xff]
    %v115 = vld [vmem:[%s4 + $0x10] sm:$0xff]
    %v116 = vld [vmem:[%s4 + $0x18] sm:$0xff]
    %v117 = vld [vmem:[%s4 + $0x20] sm:$0xff]
    %v118 = vld [vmem:[%s4 + $0x28] sm:$0xff]
    %v119 = vld [vmem:[%s4 + $0x30] sm:$0xff]
    %v120 = vld [vmem:[%s4 + $0x38] sm:$0xff]
    %v121 = vld [vmem:[%s4 + $0x40] sm:$0xff]
    %v122 = vld [vmem:[%s4 + $0x48] sm:$0xff]
    %v123 = vld [vmem:[%s4 + $0x50] sm:$0xff]
    %v124 = vld [vmem:[%s4 + $0x58] sm:$0xff]
    %v125 = vld [vmem:[%s4 + $0x60] sm:$0xff]
    %v126 = vld [vmem:[%s4 + $0x68] sm:$0xff]
    %v127 = vld [vmem:[%s4 + $0x70] sm:$0xff]
    %v128 = vld [vmem:[%s4 + $0x78] sm:$0xff]
    %129 = vmatpush.msra.mxu0 %v128
    %130 = vmatpush.msra.mxu0 %v127
    %131 = vmatpush.msra.mxu0 %v126
    %132 = vmatpush.msra.mxu0 %v125
    %133 = vmatpush.msra.mxu0 %v124
    %134 = vmatpush.msra.mxu0 %v123
    %135 = vmatpush.msra.mxu0 %v122
    %136 = vmatpush.msra.mxu0 %v121
    %137 = vmatpush.msra.mxu0 %v120
    %138 = vmatpush.msra.mxu0 %v119
    %139 = vmatpush.msra.mxu0 %v118
    %140 = vmatpush.msra.mxu0 %v117
    %141 = vmatpush.msra.mxu0 %v116
    %142 = vmatpush.msra.mxu0 %v115
    %143 = vmatpush.msra.mxu0 %v114
    %144 = vmatpush.msra.mxu0 %v113
    %145 = vmatmul.f32.gmra.mxu0 %v112
    %v146 = vpop.f32.mrf.mxu0
    %v147 = vadd.f32 0.0, %v146
    %148 = vdwg.mxu0
    %v149 = vrot.slane %v147, 4
    %v150 = vadd.f32 %v147, %v149
    %v151 = vrot.slane %v150, 2
    %v152 = vadd.f32 %v150, %v151
    %v153 = vrot.slane %v152, 1
    %v154 = vadd.f32 %v152, %v153
    %v155 = vmul.f32 %v147, %v147
    %v156 = vrot.slane %v155, 4
    %v157 = vadd.f32 %v155, %v156
    %v158 = vrot.slane %v157, 2
    %v159 = vadd.f32 %v157, %v158
    %v160 = vrot.slane %v159, 1
    %v161 = vadd.f32 %v159, %v160
    %v162 = vmul.f32 %v154, 0.125
    %v163 = vmul.f32 %v161, 0.125
    %v164 = vmul.f32 %v162, %v162
    %v165 = vsub.f32 %v163, %v164
    %v166 = vmax.f32 %v165, 0.0
    %v167 = vld [vmem:[%s5] sm:$0x1]
    %v168 = vadd.f32 %v166, 1e-05
    %v169 = vrsqrt.pop %v168
    %v170 = vmul.f32 %v169, %v168
    %v171 = vmul.f32 %v170, %v169
    %v172 = vmul.f32 0.5, %v171
    %v173 = vsub.f32 1.5, %v172
    %v174 = vmul.f32 %v169, %v173
    %vm175 = vweird.f32 %v168
    %vm176 = vweird.f32 %v169
    %vm177 = vmor %vm175, %vm176
    %v178 = vsel %vm177, %v169, %v174
    %v179 = vmul.f32 %v167, %v178
    %v180 = vld [vmem:[%s6] sm:$0x1]
    %v181 = vmul.f32 %v162, %v179
    %v182 = vsub.f32 %v180, %v181
    %v184 = vperm.slane %v179, 0
    %v186 = vmul.f32 %v147, %v184
    %v188 = vperm.slane %v182, 0
    %v190 = vadd.f32 %v186, %v188
    %v191 = vmax.f32 %v190, 0.0
    %v192 = vld [vmem:[%s7] sm:$0xff]
    %v193 = vld [vmem:[%s7 + $0x8] sm:$0xff]
    %v194 = vld [vmem:[%s7 + $0x10] sm:$0xff]
    %v195 = vld [vmem:[%s7 + $0x18] sm:$0xff]
    %v196 = vld [vmem:[%s7 + $0x20] sm:$0xff]
    %v197 = vld [vmem:[%s7 + $0x28] sm:$0xff]
    %v198 = vld [vmem:[%s7 + $0x30] sm:$0xff]
    %v199 = vld [vmem:[%s7 + $0x38] sm:$0xff]
    %v200 = vld [vmem:[%s7 + $0x40] sm:$0xff]
    %v201 = vld [vmem:[%s7 + $0x48] sm:$0xff]
    %v202 = vld [vmem:[%s7 + $0x50] sm:$0xff]
    %v203 = vld [vmem:[%s7 + $0x58] sm:$0xff]
    %v204 = vld [vmem:[%s7 + $0x60] sm:$0xff]
    %v205 = vld [vmem:[%s7 + $0x68] sm:$0xff]
    %v206 = vld [vmem:[%s7 + $0x70] sm:$0xff]
    %v207 = vld [vmem:[%s7 + $0x78] sm:$0xff]
    %v208 = vld [vmem:[%s8] sm:$0x1]
    %v210 = vperm.slane %v208, 0
    %212 = vmatpush.msra.mxu0 %v207
    %213 = vmatpush.msra.mxu0 %v206
    %214 = vmatpush.msra.mxu0 %v205
    %215 = vmatpush.msra.mxu0 %v204
    %216 = vmatpush.msra.mxu0 %v203
    %217 = vmatpush.msra.mxu0 %v202
    %218 = vmatpush.msra.mxu0 %v201
    %219 = vmatpush.msra.mxu0 %v200
    %220 = vmatpush.msra.mxu0 %v199
    %221 = vmatpush.msra.mxu0 %v198
    %222 = vmatpush.msra.mxu0 %v197
    %223 = vmatpush.msra.mxu0 %v196
    %224 = vmatpush.msra.mxu0 %v195
    %225 = vmatpush.msra.mxu0 %v194
    %226 = vmatpush.msra.mxu0 %v193
    %227 = vmatpush.msra.mxu0 %v192
    %228 = vmatmul.f32.gmra.mxu0 %v191
    %v229 = vpop.f32.mrf.mxu0
    %v230 = vadd.f32 %v210, %v229
    %231 = vdwg.mxu0
    %232 = vst [vmem:[#allocation2] sm:$0xff] %v230
    // Predicated region
    $region38: #{mlp_forward.1} parent=1 // pred_check
      _
    $region39: #{mlp_forward.1} parent=1 // pred_check_branch
      %234 = sbr.rel (0) target = $region41
    $region40: #{mlp_forward.1} parent=1 // pred_region
      %236 = vsyncadd [#allocation3], 0
      %s238 = sshll.u32 [#allocation2], 4
      %s239 = int_to_ptr.vmem [resolvable:$true] %s238
      %s240 = sshll.u32 %s9, 4
      %s241 = int_to_ptr.hbm [resolvable:$true] %s240
      %243 = dma.vmem_to_hbm [thread:$0]  %s239, 128, %s241, [#allocation3]
    $region41: #{mlp_forward.1} parent=1 // pred_fallthru
      _
    // Predicated region
    $region42: #{mlp_forward.1} parent=1 // pred_check
      _
    $region43: #{mlp_forward.1} parent=1 // pred_check_branch
      %245 = sbr.rel (0) target = $region45
    $region44: #{mlp_forward.1} parent=1 // pred_region
      %247 = dma.done [#allocation3], 128
    $region45: #{mlp_forward.1} parent=1 // pred_fallthru
      _
    %248 = vsyncpa [#allocation3], 1

</llo_original>
